<compile_context>
chip_gen: v7x
topology: tpu7x:2x2x1
jax: 0.10.0
libtpu: 0.0.40
codegen_flags: <defaults>
</compile_context>

<pallas_src>
import jax
import jax.numpy as jnp
from jax.experimental import pallas as pl
from jax.experimental.pallas import tpu as pltpu


def _make_critic_kernel(out_f, matmul_dtype):
    """Builds the fused MLP kernel. `out_f` / `matmul_dtype` are trace-time constants."""

    def kernel(x_ref,                      # [in_f,  tb]   feature-major activations
               w1_ref, b1_ref,             # [H, in_f], [H, 1]
               w2_ref, b2_ref,             # [H, H],    [H, 1]
               w3_ref, b3_ref,             # [H, H],    [H, 1]
               w4_ref, b4_ref,             # [H, out_f],[out_f, 1]
               o_ref):                     # [out_f, tb]
        # Layer 1: MXU matmul (f32 accumulate), bias + ReLU on the VPU in f32.
        h = jnp.dot(w1_ref[...], x_ref[...], preferred_element_type=jnp.float32)
        h = jnp.maximum(h + b1_ref[...], 0.0)

        # Layers 2 & 3.
        h = jnp.dot(w2_ref[...], h.astype(matmul_dtype),
                    preferred_element_type=jnp.float32)
        h = jnp.maximum(h + b2_ref[...], 0.0)

        h = jnp.dot(w3_ref[...], h.astype(matmul_dtype),
                    preferred_element_type=jnp.float32)
        h = jnp.maximum(h + b3_ref[...], 0.0)

        if out_f == 1:
            # Final layer as elementwise multiply + sublane (XLU) reduction instead of
            # an N=1 MXU pass; result [1, tb] is lane-dense.
            out = jnp.sum(h * w4_ref[...], axis=0, keepdims=True) + b4_ref[...]
        else:
            # General case: contract the feature axis -> [out_f, tb], still lane-dense.
            out = jax.lax.dot_general(
                w4_ref[...].astype(matmul_dtype), h.astype(matmul_dtype),
                dimension_numbers=(((0,), (0,)), ((), ())),
                preferred_element_type=jnp.float32) + b4_ref[...]
        o_ref[...] = out.astype(o_ref.dtype)

    return kernel


def _pick_batch_tile(B, in_f, hidden, out_f, act_itemsize):
    """Largest 128-lane-aligned tile that divides B, leaves >= 2 grid steps (pipelining
    + dual-TC sharding) and fits a conservative VMEM budget."""
    budget = 24 * 2**20  # leave headroom below the 32 MiB scoped default (v6e/v7x)
    for tb in (1024, 512, 256, 128):
        if B % tb != 0 or B // tb < 2:
            continue
        # double-buffered x/out tiles + a few live f32 activation slabs
        per_tile = tb * (2 * in_f * act_itemsize + 2 * out_f * 4 + 4 * hidden * 4)
        if per_tile <= budget:
            return tb
    return B


def critic_forward(x, params, *, batch_tile=None, matmul_dtype=jnp.float32):
    """Critic forward pass.

    x: [B, input_size] float32.
    params: list of (W, b) in PyTorch layout: W [out_features, in_features], b [out_features].
    Returns [B] when output_size == 1 (torch .squeeze(-1)), else [B, output_size].
    """
    (w1, b1), (w2, b2), (w3, b3), (w4, b4) = params
    B, in_f = x.shape
    hidden = w1.shape[0]
    out_f = w4.shape[0]

    matmul_dtype = jnp.dtype(matmul_dtype)
    act_itemsize = matmul_dtype.itemsize

    tb = _pick_batch_tile(B, in_f, hidden, out_f, act_itemsize) \
        if batch_tile is None else batch_tile
    assert B % tb == 0, "batch must be divisible by batch_tile"
    grid = (B // tb,)

    # Feature-major activations: batch on the 128-lane axis.
    xT = x.T.astype(matmul_dtype)                       # [in_f, B]
    w1c = w1.astype(matmul_dtype)                       # [H, in_f]
    w2c = w2.astype(matmul_dtype)                       # [H, H]
    w3c = w3.astype(matmul_dtype)                       # [H, H]
    w4c = w4.T.astype(jnp.float32)                      # [H, out_f] (f32: VPU/XLU path)
    b1c = b1.reshape(hidden, 1).astype(jnp.float32)
    b2c = b2.reshape(hidden, 1).astype(jnp.float32)
    b3c = b3.reshape(hidden, 1).astype(jnp.float32)
    b4c = b4.reshape(out_f, 1).astype(jnp.float32)

    def _const(shape):
        # Weights/biases: same block every grid step (resident in VMEM).
        # TODO(synk): for production-sized hidden, set pipeline_mode=pl.Buffered(1)
        # (or stage weights into scratch once) so they are not double-buffered.
        return pl.BlockSpec(shape, lambda i: (0, 0))

    flops = 2 * B * (in_f * hidden + 2 * hidden * hidden + hidden * out_f)
    weight_bytes = ((w1c.size + w2c.size + w3c.size) * act_itemsize
                    + (w4c.size + b1c.size + b2c.size + b3c.size + b4c.size) * 4)
    bytes_accessed = int(xT.size * act_itemsize + weight_bytes + out_f * B * 4)

    # Rough VMEM requirement: double-buffered BlockSpec inputs/outputs + live f32
    # activations. Keep the scoped-VMEM limit comfortably above it but safely below
    # the smallest physical VMEM (v7x: 64 MiB).
    tile_bytes = in_f * tb * act_itemsize + out_f * tb * 4
    est_vmem = 2 * (weight_bytes + tile_bytes) + 4 * hidden * tb * 4
    vmem_limit = int(min(max(2 * est_vmem, 32 * 2**20), 48 * 2**20))

    outT = pl.pallas_call(
        _make_critic_kernel(out_f, matmul_dtype),
        out_shape=jax.ShapeDtypeStruct((out_f, B), jnp.float32),
        grid_spec=pltpu.PrefetchScalarGridSpec(
            num_scalar_prefetch=0,
            grid=grid,
            in_specs=[
                pl.BlockSpec((in_f, tb), lambda i: (0, i)),     # x tile (feature-major)
                _const((hidden, in_f)), _const((hidden, 1)),
                _const((hidden, hidden)), _const((hidden, 1)),
                _const((hidden, hidden)), _const((hidden, 1)),
                _const((hidden, out_f)), _const((out_f, 1)),
            ],
            out_specs=pl.BlockSpec((out_f, tb), lambda i: (0, i)),
        ),
        compiler_params=pltpu.CompilerParams(
            dimension_semantics=("parallel",),
            vmem_limit_bytes=vmem_limit),
        cost_estimate=pl.CostEstimate(
            flops=flops, transcendentals=0, bytes_accessed=bytes_accessed),
    )(xT, w1c, b1c, w2c, b2c, w3c, b3c, w4c, b4c)

    # torch .squeeze(-1): drop the last dim only when output_size == 1.
    if out_f == 1:
        return outT[0]            # [B]
    return outT.T                 # [B, out_f]


def init_critic_params(key, input_size, hidden_size, output_size):
    """PyTorch-Linear-like uniform(+-1/sqrt(fan_in)) init; W is [out, in], b is [out]."""
    dims = [(input_size, hidden_size),
            (hidden_size, hidden_size),
            (hidden_size, hidden_size),
            (hidden_size, output_size)]
    params = []
    for fan_in, fan_out in dims:
        key, kw, kb = jax.random.split(key, 3)
        bound = 1.0 / (fan_in ** 0.5)
        w = jax.random.uniform(kw, (fan_out, fan_in), jnp.float32, -bound, bound)
        b = jax.random.uniform(kb, (fan_out,), jnp.float32, -bound, bound)
        params.append((w, b))
    return params


if __name__ == "__main__":
    # Small shapes consistent with the module: Critic(input_size=32, output_size=1,
    # hidden_size=32, ...), batch of 8 states.
    B, INPUT, HIDDEN, OUTPUT = 8, 32, 32, 1

    key = jax.random.PRNGKey(0)
    kx, kp = jax.random.split(key)
    x = jax.random.normal(kx, (B, INPUT), dtype=jnp.float32)
    params = init_critic_params(kp, INPUT, HIDDEN, OUTPUT)

    values = jax.block_until_ready(critic_forward(x, params))

    # Pure-JAX reference of the same MLP (PyTorch layout: x @ W.T + b).
    (w1, b1), (w2, b2), (w3, b3), (w4, b4) = params
    h = jnp.maximum(x @ w1.T + b1, 0.0)
    h = jnp.maximum(h @ w2.T + b2, 0.0)
    h = jnp.maximum(h @ w3.T + b3, 0.0)
    ref = jnp.squeeze(h @ w4.T + b4, axis=-1)

    assert values.shape == (B,)
    assert jnp.allclose(values, ref, atol=2e-5, rtol=2e-5), \
        float(jnp.max(jnp.abs(values - ref)))

    print("KERNEL_OK")
</pallas_src>

<mosaic_0001>
module attributes {stable_mosaic.version = 11 : i64} {
  func.func @kernel(%arg0: i32, %arg1: memref<32x8xf32, #tpu.memory_space<vmem>>, %arg2: memref<32x32xf32, #tpu.memory_space<vmem>>, %arg3: memref<32x1xf32, #tpu.memory_space<vmem>>, %arg4: memref<32x32xf32, #tpu.memory_space<vmem>>, %arg5: memref<32x1xf32, #tpu.memory_space<vmem>>, %arg6: memref<32x32xf32, #tpu.memory_space<vmem>>, %arg7: memref<32x1xf32, #tpu.memory_space<vmem>>, %arg8: memref<32x1xf32, #tpu.memory_space<vmem>>, %arg9: memref<1x1xf32, #tpu.memory_space<vmem>>, %arg10: memref<1x8xf32, #tpu.memory_space<vmem>>) attributes {dimension_semantics = [#tpu.dimension_semantics<parallel>], iteration_bounds = array<i64: 1>, scalar_prefetch = 0 : i64, scratch_operands = 0 : i64, tpu.core_type = #tpu.core_type<tc>, window_params = [{transform_indices = @transform_0, window_bounds = array<i64: 32, 8>}, {pipeline_mode = #tpu.pipeline_mode<synchronous>, transform_indices = @transform_1, window_bounds = array<i64: 32, 32>}, {pipeline_mode = #tpu.pipeline_mode<synchronous>, transform_indices = @transform_2, window_bounds = array<i64: 32, 1>}, {pipeline_mode = #tpu.pipeline_mode<synchronous>, transform_indices = @transform_3, window_bounds = array<i64: 32, 32>}, {pipeline_mode = #tpu.pipeline_mode<synchronous>, transform_indices = @transform_4, window_bounds = array<i64: 32, 1>}, {pipeline_mode = #tpu.pipeline_mode<synchronous>, transform_indices = @transform_5, window_bounds = array<i64: 32, 32>}, {pipeline_mode = #tpu.pipeline_mode<synchronous>, transform_indices = @transform_6, window_bounds = array<i64: 32, 1>}, {pipeline_mode = #tpu.pipeline_mode<synchronous>, transform_indices = @transform_7, window_bounds = array<i64: 32, 1>}, {pipeline_mode = #tpu.pipeline_mode<synchronous>, transform_indices = @transform_8, window_bounds = array<i64: 1, 1>}, {transform_indices = @transform_9, window_bounds = array<i64: 1, 8>}]} {
    %c0 = arith.constant 0 : index
    %c0_0 = arith.constant 0 : index
    %0 = vector.load %arg2[%c0, %c0_0] : memref<32x32xf32, #tpu.memory_space<vmem>>, vector<32x32xf32>
    %c0_1 = arith.constant 0 : index
    %c0_2 = arith.constant 0 : index
    %1 = vector.load %arg1[%c0_1, %c0_2] : memref<32x8xf32, #tpu.memory_space<vmem>>, vector<32x8xf32>
    %cst = arith.constant dense<0.000000e+00> : vector<32x8xf32>
    %2 = tpu.matmul %0, %1, %cst {dimension_numbers = #tpu.dot_dimension_numbers<[1], [0], [0], [1], [0, 0, 1, 1], [], []>} : vector<32x32xf32>, vector<32x8xf32>, vector<32x8xf32> -> vector<32x8xf32>
    %c0_3 = arith.constant 0 : index
    %c0_4 = arith.constant 0 : index
    %3 = vector.load %arg3[%c0_3, %c0_4] : memref<32x1xf32, #tpu.memory_space<vmem>>, vector<32x1xf32>
    %4 = vector.broadcast %3 : vector<32x1xf32> to vector<32x8xf32>
    %5 = arith.addf %2, %4 : vector<32x8xf32>
    %cst_5 = arith.constant 0.000000e+00 : f32
    %6 = vector.broadcast %cst_5 : f32 to vector<32x8xf32>
    %7 = arith.maximumf %5, %6 : vector<32x8xf32>
    %c0_6 = arith.constant 0 : index
    %c0_7 = arith.constant 0 : index
    %8 = vector.load %arg4[%c0_6, %c0_7] : memref<32x32xf32, #tpu.memory_space<vmem>>, vector<32x32xf32>
    %cst_8 = arith.constant dense<0.000000e+00> : vector<32x8xf32>
    %9 = tpu.matmul %8, %7, %cst_8 {dimension_numbers = #tpu.dot_dimension_numbers<[1], [0], [0], [1], [0, 0, 1, 1], [], []>} : vector<32x32xf32>, vector<32x8xf32>, vector<32x8xf32> -> vector<32x8xf32>
    %c0_9 = arith.constant 0 : index
    %c0_10 = arith.constant 0 : index
    %10 = vector.load %arg5[%c0_9, %c0_10] : memref<32x1xf32, #tpu.memory_space<vmem>>, vector<32x1xf32>
    %11 = vector.broadcast %10 : vector<32x1xf32> to vector<32x8xf32>
    %12 = arith.addf %9, %11 : vector<32x8xf32>
    %cst_11 = arith.constant 0.000000e+00 : f32
    %13 = vector.broadcast %cst_11 : f32 to vector<32x8xf32>
    %14 = arith.maximumf %12, %13 : vector<32x8xf32>
    %c0_12 = arith.constant 0 : index
    %c0_13 = arith.constant 0 : index
    %15 = vector.load %arg6[%c0_12, %c0_13] : memref<32x32xf32, #tpu.memory_space<vmem>>, vector<32x32xf32>
    %cst_14 = arith.constant dense<0.000000e+00> : vector<32x8xf32>
    %16 = tpu.matmul %15, %14, %cst_14 {dimension_numbers = #tpu.dot_dimension_numbers<[1], [0], [0], [1], [0, 0, 1, 1], [], []>} : vector<32x32xf32>, vector<32x8xf32>, vector<32x8xf32> -> vector<32x8xf32>
    %c0_15 = arith.constant 0 : index
    %c0_16 = arith.constant 0 : index
    %17 = vector.load %arg7[%c0_15, %c0_16] : memref<32x1xf32, #tpu.memory_space<vmem>>, vector<32x1xf32>
    %18 = vector.broadcast %17 : vector<32x1xf32> to vector<32x8xf32>
    %19 = arith.addf %16, %18 : vector<32x8xf32>
    %cst_17 = arith.constant 0.000000e+00 : f32
    %20 = vector.broadcast %cst_17 : f32 to vector<32x8xf32>
    %21 = arith.maximumf %19, %20 : vector<32x8xf32>
    %c0_18 = arith.constant 0 : index
    %c0_19 = arith.constant 0 : index
    %22 = vector.load %arg8[%c0_18, %c0_19] : memref<32x1xf32, #tpu.memory_space<vmem>>, vector<32x1xf32>
    %23 = vector.broadcast %22 : vector<32x1xf32> to vector<32x8xf32>
    %24 = arith.mulf %21, %23 : vector<32x8xf32>
    %cst_20 = arith.constant dense<0.000000e+00> : vector<8xf32>
    %25 = vector.multi_reduction <add>, %24, %cst_20 [0] : vector<32x8xf32> to vector<8xf32>
    %26 = vector.shape_cast %25 : vector<8xf32> to vector<1x8xf32>
    %c0_21 = arith.constant 0 : index
    %c0_22 = arith.constant 0 : index
    %27 = vector.load %arg9[%c0_21, %c0_22] : memref<1x1xf32, #tpu.memory_space<vmem>>, vector<1x1xf32>
    %28 = vector.broadcast %27 : vector<1x1xf32> to vector<1x8xf32>
    %29 = arith.addf %26, %28 : vector<1x8xf32>
    %c0_23 = arith.constant 0 : index
    %c0_24 = arith.constant 0 : index
    %30 = vector.load %arg10[%c0_23, %c0_24] : memref<1x8xf32, #tpu.memory_space<vmem>>, vector<1x8xf32>
    tpu.vector_store %arg10[%c0_23, %c0_24], %29 {strides = array<i32>} : memref<1x8xf32, #tpu.memory_space<vmem>>, vector<1x8xf32>,
    return
  }
  func.func @transform_0(%arg0: i32) -> (i32, i32) {
    %c0_i32 = arith.constant 0 : i32
    %c0_i32_0 = arith.constant 0 : i32
    return %c0_i32, %arg0 : i32, i32
  }
  func.func @transform_1(%arg0: i32) -> (i32, i32) {
    %c0_i32 = arith.constant 0 : i32
    %c0_i32_0 = arith.constant 0 : i32
    %c0_i32_1 = arith.constant 0 : i32
    return %c0_i32, %c0_i32_0 : i32, i32
  }
  func.func @transform_2(%arg0: i32) -> (i32, i32) {
    %c0_i32 = arith.constant 0 : i32
    %c0_i32_0 = arith.constant 0 : i32
    %c0_i32_1 = arith.constant 0 : i32
    return %c0_i32, %c0_i32_0 : i32, i32
  }
  func.func @transform_3(%arg0: i32) -> (i32, i32) {
    %c0_i32 = arith.constant 0 : i32
    %c0_i32_0 = arith.constant 0 : i32
    %c0_i32_1 = arith.constant 0 : i32
    return %c0_i32, %c0_i32_0 : i32, i32
  }
  func.func @transform_4(%arg0: i32) -> (i32, i32) {
    %c0_i32 = arith.constant 0 : i32
    %c0_i32_0 = arith.constant 0 : i32
    %c0_i32_1 = arith.constant 0 : i32
    return %c0_i32, %c0_i32_0 : i32, i32
  }
  func.func @transform_5(%arg0: i32) -> (i32, i32) {
    %c0_i32 = arith.constant 0 : i32
    %c0_i32_0 = arith.constant 0 : i32
    %c0_i32_1 = arith.constant 0 : i32
    return %c0_i32, %c0_i32_0 : i32, i32
  }
  func.func @transform_6(%arg0: i32) -> (i32, i32) {
    %c0_i32 = arith.constant 0 : i32
    %c0_i32_0 = arith.constant 0 : i32
    %c0_i32_1 = arith.constant 0 : i32
    return %c0_i32, %c0_i32_0 : i32, i32
  }
  func.func @transform_7(%arg0: i32) -> (i32, i32) {
    %c0_i32 = arith.constant 0 : i32
    %c0_i32_0 = arith.constant 0 : i32
    %c0_i32_1 = arith.constant 0 : i32
    return %c0_i32, %c0_i32_0 : i32, i32
  }
  func.func @transform_8(%arg0: i32) -> (i32, i32) {
    %c0_i32 = arith.constant 0 : i32
    %c0_i32_0 = arith.constant 0 : i32
    %c0_i32_1 = arith.constant 0 : i32
    return %c0_i32, %c0_i32_0 : i32, i32
  }
  func.func @transform_9(%arg0: i32) -> (i32, i32) {
    %c0_i32 = arith.constant 0 : i32
    %c0_i32_0 = arith.constant 0 : i32
    return %c0_i32, %arg0 : i32, i32
  }
}

</mosaic_0001>

<llo_original>
// kernel: tpu_custom_call.1
$region0: #{tpu_custom_call.1}
  #allocation0 [shape = 'u32[]', space=smem, size = 0x4, offset = 0x4, fixed_abs, tag = 'smem constant byte address 0x4 - core index']
  #allocation1 [shape = 'u32[144,128]{1,0:T(1,128)}', space=vmem, size = 0x12000, scoped, tag = 'internal scratch']
  #allocation2 [shape = 'f32[1,1]{1,0:T(1,128)S(1)}', space=vmem, size = 0x200, scoped, tag = 'scoped memory for tpu_custom_call.1']
  %s0 = inlined_call_operand.vmem [shape: f32[32,8], index: 0, kind: input, shape index: {}]
  %s1 = inlined_call_operand.vmem [shape: f32[32,32], index: 1, kind: input, shape index: {}]
  %s2 = inlined_call_operand.vmem [shape: f32[32,1], index: 2, kind: input, shape index: {}]
  %s3 = inlined_call_operand.vmem [shape: f32[32,32], index: 3, kind: input, shape index: {}]
  %s4 = inlined_call_operand.vmem [shape: f32[32,1], index: 4, kind: input, shape index: {}]
  %s5 = inlined_call_operand.vmem [shape: f32[32,32], index: 5, kind: input, shape index: {}]
  %s6 = inlined_call_operand.vmem [shape: f32[32,1], index: 6, kind: input, shape index: {}]
  %s7 = inlined_call_operand.vmem [shape: f32[32,1], index: 7, kind: input, shape index: {}]
  %s8 = inlined_call_operand.<no memory space> [shape: f32[1,1], index: 8, kind: input, shape index: {}]
  %s9 = inlined_call_operand.hbm [shape: f32[1,8], index: 9, kind: output, shape index: {}]
  %s10 = sld [smem:[#allocation0]]
  $region46: #{tpu_custom_call.1} parent=0
    _
  %s12 = ssub.s32 1, %s10
  %s13 = scalar_select 0, %s12, %s10
  %v14 = vstv %s8
  %15 = vst [vmem:[#allocation2] sm:$0x1] %v14
  $region1: #{tpu_custom_call.1} parent=0
    #allocation3 [shape = 'u8[512]{0}', space=vmem, size = 0x400, scoped, tag = 'output window, operand 0, single buffered']
    #allocation4 [shape = 's32[1]{0}', space=sflag, size = 0x4, scoped, tag = 'scoped memory for tpu_custom_call.1']
    %16 = vsyncpa [#allocation4], 0
    // Predicated region
    $region2: #{tpu_custom_call.1} parent=1 // pred_check
      _
    $region3: #{tpu_custom_call.1} parent=1 // pred_check_branch
      %18 = sbr.rel (0) target = $region5
    $region4: #{tpu_custom_call.1} parent=1 // pred_region
      _
    $region5: #{tpu_custom_call.1} parent=1 // pred_fallthru
      _
    // Predicated region
    $region6: #{tpu_custom_call.1} parent=1 // pred_check
      _
    $region7: #{tpu_custom_call.1} parent=1 // pred_check_branch
      %20 = sbr.rel (0) target = $region9
    $region8: #{tpu_custom_call.1} parent=1 // pred_region
      _
    $region9: #{tpu_custom_call.1} parent=1 // pred_fallthru
      _
    // Predicated region
    $region10: #{tpu_custom_call.1} parent=1 // pred_check
      _
    $region11: #{tpu_custom_call.1} parent=1 // pred_check_branch
      %22 = sbr.rel (0) target = $region13
    $region12: #{tpu_custom_call.1} parent=1 // pred_region
      _
    $region13: #{tpu_custom_call.1} parent=1 // pred_fallthru
      _
    // Predicated region
    $region14: #{tpu_custom_call.1} parent=1 // pred_check
      _
    $region15: #{tpu_custom_call.1} parent=1 // pred_check_branch
      %24 = sbr.rel (0) target = $region17
    $region16: #{tpu_custom_call.1} parent=1 // pred_region
      _
    $region17: #{tpu_custom_call.1} parent=1 // pred_fallthru
      _
    // Predicated region
    $region18: #{tpu_custom_call.1} parent=1 // pred_check
      _
    $region19: #{tpu_custom_call.1} parent=1 // pred_check_branch
      %26 = sbr.rel (0) target = $region21
    $region20: #{tpu_custom_call.1} parent=1 // pred_region
      _
    $region21: #{tpu_custom_call.1} parent=1 // pred_fallthru
      _
    // Predicated region
    $region22: #{tpu_custom_call.1} parent=1 // pred_check
      _
    $region23: #{tpu_custom_call.1} parent=1 // pred_check_branch
      %28 = sbr.rel (0) target = $region25
    $region24: #{tpu_custom_call.1} parent=1 // pred_region
      _
    $region25: #{tpu_custom_call.1} parent=1 // pred_fallthru
      _
    // Predicated region
    $region26: #{tpu_custom_call.1} parent=1 // pred_check
      _
    $region27: #{tpu_custom_call.1} parent=1 // pred_check_branch
      %30 = sbr.rel (0) target = $region29
    $region28: #{tpu_custom_call.1} parent=1 // pred_region
      _
    $region29: #{tpu_custom_call.1} parent=1 // pred_fallthru
      _
    // Predicated region
    $region30: #{tpu_custom_call.1} parent=1 // pred_check
      _
    $region31: #{tpu_custom_call.1} parent=1 // pred_check_branch
      %32 = sbr.rel (0) target = $region33
    $region32: #{tpu_custom_call.1} parent=1 // pred_region
      _
    $region33: #{tpu_custom_call.1} parent=1 // pred_fallthru
      _
    // Predicated region
    $region34: #{tpu_custom_call.1} parent=1 // pred_check
      _
    $region35: #{tpu_custom_call.1} parent=1 // pred_check_branch
      %34 = sbr.rel (0) target = $region37
    $region36: #{tpu_custom_call.1} parent=1 // pred_region
      _
    $region37: #{tpu_custom_call.1} parent=1 // pred_fallthru
      _
    %v35 = vld [vmem:[%s1] sm:$0xff]
    %v36 = vld [vmem:[%s1 + $0x8] sm:$0xff]
    %v37 = vld [vmem:[%s1 + $0x10] sm:$0xff]
    %v38 = vld [vmem:[%s1 + $0x18] sm:$0xff]
    %v39 = vld [vmem:[%s0] sm:$0xff]
    %v40 = vld [vmem:[%s0 + $0x8] sm:$0xff]
    %v41 = vld [vmem:[%s0 + $0x10] sm:$0xff]
    %v42 = vld [vmem:[%s0 + $0x18] sm:$0xff]
    %v43 = vld [vmem:[%s2] sm:$0xff]
    %v44 = vld [vmem:[%s2 + $0x8] sm:$0xff]
    %v45 = vld [vmem:[%s2 + $0x10] sm:$0xff]
    %v46 = vld [vmem:[%s2 + $0x18] sm:$0xff]
    %48 = vset.pattern.permute.xlu0 0
    %49 = vperm.xlu0 %48, %v43
    %v50 = vpop.permute.xlu0 %49
    %53 = vset.pattern.permute.xlu0 0
    %54 = vperm.xlu0 %53, %v44
    %v55 = vpop.permute.xlu0 %54
    %58 = vset.pattern.permute.xlu0 0
    %59 = vperm.xlu0 %58, %v45
    %v60 = vpop.permute.xlu0 %59
    %63 = vset.pattern.permute.xlu0 0
    %64 = vperm.xlu0 %63, %v46
    %v65 = vpop.permute.xlu0 %64
    %vm67 = vcmask 261120
    %v69 = vsel %vm67, %v35, 0
    %v72 = vsel %vm67, %v36, 0
    %v75 = vsel %vm67, %v37, 0
    %v78 = vsel %vm67, %v38, 0
    %80 = vmatprep.subr.mxu0 0.0
    %81 = vmatpush1.msra.mxu0 %v39
    %82 = vmatprep.subr.mxu0 0.0
    %83 = vmatpush1.msra.mxu0 %v40
    %84 = vmatprep.subr.mxu0 0.0
    %85 = vmatpush1.msra.mxu0 %v41
    %86 = vmatprep.subr.mxu0 0.0
    %87 = vmatpush1.msra.mxu0 %v42
    %88 = vmatprep.subr.mxu0 0.0
    %89 = vmatpush1.msra.mxu0 0.0
    %90 = vmatprep.subr.mxu0 0.0
    %91 = vmatpush1.msra.mxu0 0.0
    %92 = vmatprep.subr.mxu0 0.0
    %93 = vmatpush1.msra.mxu0 0.0
    %94 = vmatprep.subr.mxu0 0.0
    %95 = vmatpush1.msra.mxu0 0.0
    %96 = vmatprep.subr.mxu0 0.0
    %97 = vmatpush1.msra.mxu0 0.0
    %98 = vmatprep.subr.mxu0 0.0
    %99 = vmatpush1.msra.mxu0 0.0
    %100 = vmatprep.subr.mxu0 0.0
    %101 = vmatpush1.msra.mxu0 0.0
    %102 = vmatprep.subr.mxu0 0.0
    %103 = vmatpush1.msra.mxu0 0.0
    %104 = vmatprep.subr.mxu0 0.0
    %105 = vmatpush1.msra.mxu0 0.0
    %106 = vmatprep.subr.mxu0 0.0
    %107 = vmatpush1.msra.mxu0 0.0
    %108 = vmatprep.subr.mxu0 0.0
    %109 = vmatpush1.msra.mxu0 0.0
    %110 = vmatprep.subr.mxu0 0.0
    %111 = vmatpush1.msra.mxu0 0.0
    %112 = vmatprep.subr.mxu0 0.0
    %113 = vmatpush1.msra.mxu0 0.0
    %114 = vmatprep.subr.mxu0 0.0
    %115 = vmatpush1.msra.mxu0 0.0
    %116 = vmatprep.subr.mxu0 0.0
    %117 = vmatpush1.msra.mxu0 0.0
    %118 = vmatprep.subr.mxu0 0.0
    %119 = vmatpush1.msra.mxu0 0.0
    %120 = vmatprep.subr.mxu0 0.0
    %121 = vmatpush1.msra.mxu0 0.0
    %122 = vmatprep.subr.mxu0 0.0
    %123 = vmatpush1.msra.mxu0 0.0
    %124 = vmatprep.subr.mxu0 0.0
    %125 = vmatpush1.msra.mxu0 0.0
    %126 = vmatprep.subr.mxu0 0.0
    %127 = vmatpush1.msra.mxu0 0.0
    %128 = vmatprep.subr.mxu0 0.0
    %129 = vmatpush1.msra.mxu0 0.0
    %130 = vmatprep.subr.mxu0 0.0
    %131 = vmatpush1.msra.mxu0 0.0
    %132 = vmatprep.subr.mxu0 0.0
    %133 = vmatpush1.msra.mxu0 0.0
    %134 = vmatprep.subr.mxu0 0.0
    %135 = vmatpush1.msra.mxu0 0.0
    %136 = vmatprep.subr.mxu0 0.0
    %137 = vmatpush1.msra.mxu0 0.0
    %138 = vmatprep.subr.mxu0 0.0
    %139 = vmatpush1.msra.mxu0 0.0
    %140 = vmatprep.subr.mxu0 0.0
    %141 = vmatpush1.msra.mxu0 0.0
    %142 = vmatprep.subr.mxu0 0.0
    %143 = vmatpush1.msra.mxu0 0.0
    %144 = vmatprep.mubr.f32.mxu0 0.0
    %145 = vmatmul.mubr.f32.gmra.mrb[0].mxu0 %v69
    %v146 = vpop.f32.mrb[0].mxu0
    %v147 = vadd.f32 %v50, %v146
    %v148 = vpop.f32.mrb[0].mxu0
    %149 = vmatprep.mubr.f32.mxu0 0.0
    %150 = vmatmul.mubr.f32.gmra.mrb[0].mxu0 %v72
    %v151 = vpop.f32.mrb[0].mxu0
    %v152 = vadd.f32 %v55, %v151
    %v153 = vpop.f32.mrb[0].mxu0
    %154 = vmatprep.mubr.f32.mxu0 0.0
    %155 = vmatmul.mubr.f32.gmra.mrb[0].mxu0 %v75
    %v156 = vpop.f32.mrb[0].mxu0
    %v157 = vadd.f32 %v60, %v156
    %v158 = vpop.f32.mrb[0].mxu0
    %159 = vmatprep.mubr.f32.mxu0 0.0
    %160 = vmatmul.mubr.f32.gmra.mrb[0].mxu0 %v78
    %v161 = vpop.f32.mrb[0].mxu0
    %v162 = vadd.f32 %v65, %v161
    %v163 = vpop.f32.mrb[0].mxu0
    %164 = vdwg.mxu0
    %v165 = vmax.f32 %v147, 0.0
    %v166 = vmax.f32 %v152, 0.0
    %v167 = vmax.f32 %v157, 0.0
    %v168 = vmax.f32 %v162, 0.0
    %v169 = vld [vmem:[%s3] sm:$0xff]
    %v170 = vld [vmem:[%s3 + $0x8] sm:$0xff]
    %v171 = vld [vmem:[%s3 + $0x10] sm:$0xff]
    %v172 = vld [vmem:[%s3 + $0x18] sm:$0xff]
    %v173 = vld [vmem:[%s4] sm:$0xff]
    %v174 = vld [vmem:[%s4 + $0x8] sm:$0xff]
    %v175 = vld [vmem:[%s4 + $0x10] sm:$0xff]
    %v176 = vld [vmem:[%s4 + $0x18] sm:$0xff]
    %178 = vset.pattern.permute.xlu0 0
    %179 = vperm.xlu0 %178, %v173
    %v180 = vpop.permute.xlu0 %179
    %183 = vset.pattern.permute.xlu0 0
    %184 = vperm.xlu0 %183, %v174
    %v185 = vpop.permute.xlu0 %184
    %188 = vset.pattern.permute.xlu0 0
    %189 = vperm.xlu0 %188, %v175
    %v190 = vpop.permute.xlu0 %189
    %193 = vset.pattern.permute.xlu0 0
    %194 = vperm.xlu0 %193, %v176
    %v195 = vpop.permute.xlu0 %194
    %v198 = vsel %vm67, %v169, 0
    %v201 = vsel %vm67, %v170, 0
    %v204 = vsel %vm67, %v171, 0
    %v207 = vsel %vm67, %v172, 0
    %209 = vmatprep.subr.mxu0 0.0
    %210 = vmatpush1.msra.mxu0 %v165
    %211 = vmatprep.subr.mxu0 0.0
    %212 = vmatpush1.msra.mxu0 %v166
    %213 = vmatprep.subr.mxu0 0.0
    %214 = vmatpush1.msra.mxu0 %v167
    %215 = vmatprep.subr.mxu0 0.0
    %216 = vmatpush1.msra.mxu0 %v168
    %217 = vmatprep.subr.mxu0 0.0
    %218 = vmatpush1.msra.mxu0 0.0
    %219 = vmatprep.subr.mxu0 0.0
    %220 = vmatpush1.msra.mxu0 0.0
    %221 = vmatprep.subr.mxu0 0.0
    %222 = vmatpush1.msra.mxu0 0.0
    %223 = vmatprep.subr.mxu0 0.0
    %224 = vmatpush1.msra.mxu0 0.0
    %225 = vmatprep.subr.mxu0 0.0
    %226 = vmatpush1.msra.mxu0 0.0
    %227 = vmatprep.subr.mxu0 0.0
    %228 = vmatpush1.msra.mxu0 0.0
    %229 = vmatprep.subr.mxu0 0.0
    %230 = vmatpush1.msra.mxu0 0.0
    %231 = vmatprep.subr.mxu0 0.0
    %232 = vmatpush1.msra.mxu0 0.0
    %233 = vmatprep.subr.mxu0 0.0
    %234 = vmatpush1.msra.mxu0 0.0
    %235 = vmatprep.subr.mxu0 0.0
    %236 = vmatpush1.msra.mxu0 0.0
    %237 = vmatprep.subr.mxu0 0.0
    %238 = vmatpush1.msra.mxu0 0.0
    %239 = vmatprep.subr.mxu0 0.0
    %240 = vmatpush1.msra.mxu0 0.0
    %241 = vmatprep.subr.mxu0 0.0
    %242 = vmatpush1.msra.mxu0 0.0
    %243 = vmatprep.subr.mxu0 0.0
    %244 = vmatpush1.msra.mxu0 0.0
    %245 = vmatprep.subr.mxu0 0.0
    %246 = vmatpush1.msra.mxu0 0.0
    %247 = vmatprep.subr.mxu0 0.0
    %248 = vmatpush1.msra.mxu0 0.0
    %249 = vmatprep.subr.mxu0 0.0
    %250 = vmatpush1.msra.mxu0 0.0
    %251 = vmatprep.subr.mxu0 0.0
    %252 = vmatpush1.msra.mxu0 0.0
    %253 = vmatprep.subr.mxu0 0.0
    %254 = vmatpush1.msra.mxu0 0.0
    %255 = vmatprep.subr.mxu0 0.0
    %256 = vmatpush1.msra.mxu0 0.0
    %257 = vmatprep.subr.mxu0 0.0
    %258 = vmatpush1.msra.mxu0 0.0
    %259 = vmatprep.subr.mxu0 0.0
    %260 = vmatpush1.msra.mxu0 0.0
    %261 = vmatprep.subr.mxu0 0.0
    %262 = vmatpush1.msra.mxu0 0.0
    %263 = vmatprep.subr.mxu0 0.0
    %264 = vmatpush1.msra.mxu0 0.0
    %265 = vmatprep.subr.mxu0 0.0
    %266 = vmatpush1.msra.mxu0 0.0
    %267 = vmatprep.subr.mxu0 0.0
    %268 = vmatpush1.msra.mxu0 0.0
    %269 = vmatprep.subr.mxu0 0.0
    %270 = vmatpush1.msra.mxu0 0.0
    %271 = vmatprep.subr.mxu0 0.0
    %272 = vmatpush1.msra.mxu0 0.0
    %273 = vmatprep.mubr.f32.mxu0 0.0
    %274 = vmatmul.mubr.f32.gmra.mrb[0].mxu0 %v198
    %v275 = vpop.f32.mrb[0].mxu0
    %v276 = vadd.f32 %v180, %v275
    %v277 = vpop.f32.mrb[0].mxu0
    %278 = vmatprep.mubr.f32.mxu0 0.0
    %279 = vmatmul.mubr.f32.gmra.mrb[0].mxu0 %v201
    %v280 = vpop.f32.mrb[0].mxu0
    %v281 = vadd.f32 %v185, %v280
    %v282 = vpop.f32.mrb[0].mxu0
    %283 = vmatprep.mubr.f32.mxu0 0.0
    %284 = vmatmul.mubr.f32.gmra.mrb[0].mxu0 %v204
    %v285 = vpop.f32.mrb[0].mxu0
    %v286 = vadd.f32 %v190, %v285
    %v287 = vpop.f32.mrb[0].mxu0
    %288 = vmatprep.mubr.f32.mxu0 0.0
    %289 = vmatmul.mubr.f32.gmra.mrb[0].mxu0 %v207
    %v290 = vpop.f32.mrb[0].mxu0
    %v291 = vadd.f32 %v195, %v290
    %v292 = vpop.f32.mrb[0].mxu0
    %293 = vdwg.mxu0
    %v294 = vmax.f32 %v276, 0.0
    %v295 = vmax.f32 %v281, 0.0
    %v296 = vmax.f32 %v286, 0.0
    %v297 = vmax.f32 %v291, 0.0
    %v298 = vld [vmem:[%s5] sm:$0xff]
    %v299 = vld [vmem:[%s5 + $0x8] sm:$0xff]
    %v300 = vld [vmem:[%s5 + $0x10] sm:$0xff]
    %v301 = vld [vmem:[%s5 + $0x18] sm:$0xff]
    %v302 = vld [vmem:[%s6] sm:$0xff]
    %v303 = vld [vmem:[%s6 + $0x8] sm:$0xff]
    %v304 = vld [vmem:[%s6 + $0x10] sm:$0xff]
    %v305 = vld [vmem:[%s6 + $0x18] sm:$0xff]
    %307 = vset.pattern.permute.xlu0 0
    %308 = vperm.xlu0 %307, %v302
    %v309 = vpop.permute.xlu0 %308
    %312 = vset.pattern.permute.xlu0 0
    %313 = vperm.xlu0 %312, %v303
    %v314 = vpop.permute.xlu0 %313
    %317 = vset.pattern.permute.xlu0 0
    %318 = vperm.xlu0 %317, %v304
    %v319 = vpop.permute.xlu0 %318
    %322 = vset.pattern.permute.xlu0 0
    %323 = vperm.xlu0 %322, %v305
    %v324 = vpop.permute.xlu0 %323
    %v327 = vsel %vm67, %v298, 0
    %v330 = vsel %vm67, %v299, 0
    %v333 = vsel %vm67, %v300, 0
    %v336 = vsel %vm67, %v301, 0
    %338 = vmatprep.subr.mxu0 0.0
    %339 = vmatpush1.msra.mxu0 %v294
    %340 = vmatprep.subr.mxu0 0.0
    %341 = vmatpush1.msra.mxu0 %v295
    %342 = vmatprep.subr.mxu0 0.0
    %343 = vmatpush1.msra.mxu0 %v296
    %344 = vmatprep.subr.mxu0 0.0
    %345 = vmatpush1.msra.mxu0 %v297
    %346 = vmatprep.subr.mxu0 0.0
    %347 = vmatpush1.msra.mxu0 0.0
    %348 = vmatprep.subr.mxu0 0.0
    %349 = vmatpush1.msra.mxu0 0.0
    %350 = vmatprep.subr.mxu0 0.0
    %351 = vmatpush1.msra.mxu0 0.0
    %352 = vmatprep.subr.mxu0 0.0
    %353 = vmatpush1.msra.mxu0 0.0
    %354 = vmatprep.subr.mxu0 0.0
    %355 = vmatpush1.msra.mxu0 0.0
    %356 = vmatprep.subr.mxu0 0.0
    %357 = vmatpush1.msra.mxu0 0.0
    %358 = vmatprep.subr.mxu0 0.0
    %359 = vmatpush1.msra.mxu0 0.0
    %360 = vmatprep.subr.mxu0 0.0
    %361 = vmatpush1.msra.mxu0 0.0
    %362 = vmatprep.subr.mxu0 0.0
    %363 = vmatpush1.msra.mxu0 0.0
    %364 = vmatprep.subr.mxu0 0.0
    %365 = vmatpush1.msra.mxu0 0.0
    %366 = vmatprep.subr.mxu0 0.0
    %367 = vmatpush1.msra.mxu0 0.0
    %368 = vmatprep.subr.mxu0 0.0
    %369 = vmatpush1.msra.mxu0 0.0
    %370 = vmatprep.subr.mxu0 0.0
    %371 = vmatpush1.msra.mxu0 0.0
    %372 = vmatprep.subr.mxu0 0.0
    %373 = vmatpush1.msra.mxu0 0.0
    %374 = vmatprep.subr.mxu0 0.0
    %375 = vmatpush1.msra.mxu0 0.0
    %376 = vmatprep.subr.mxu0 0.0
    %377 = vmatpush1.msra.mxu0 0.0
    %378 = vmatprep.subr.mxu0 0.0
    %379 = vmatpush1.msra.mxu0 0.0
    %380 = vmatprep.subr.mxu0 0.0
    %381 = vmatpush1.msra.mxu0 0.0
    %382 = vmatprep.subr.mxu0 0.0
    %383 = vmatpush1.msra.mxu0 0.0
    %384 = vmatprep.subr.mxu0 0.0
    %385 = vmatpush1.msra.mxu0 0.0
    %386 = vmatprep.subr.mxu0 0.0
    %387 = vmatpush1.msra.mxu0 0.0
    %388 = vmatprep.subr.mxu0 0.0
    %389 = vmatpush1.msra.mxu0 0.0
    %390 = vmatprep.subr.mxu0 0.0
    %391 = vmatpush1.msra.mxu0 0.0
    %392 = vmatprep.subr.mxu0 0.0
    %393 = vmatpush1.msra.mxu0 0.0
    %394 = vmatprep.subr.mxu0 0.0
    %395 = vmatpush1.msra.mxu0 0.0
    %396 = vmatprep.subr.mxu0 0.0
    %397 = vmatpush1.msra.mxu0 0.0
    %398 = vmatprep.subr.mxu0 0.0
    %399 = vmatpush1.msra.mxu0 0.0
    %400 = vmatprep.subr.mxu0 0.0
    %401 = vmatpush1.msra.mxu0 0.0
    %402 = vmatprep.mubr.f32.mxu0 0.0
    %403 = vmatmul.mubr.f32.gmra.mrb[0].mxu0 %v327
    %v404 = vpop.f32.mrb[0].mxu0
    %v405 = vadd.f32 %v309, %v404
    %v406 = vpop.f32.mrb[0].mxu0
    %407 = vmatprep.mubr.f32.mxu0 0.0
    %408 = vmatmul.mubr.f32.gmra.mrb[0].mxu0 %v330
    %v409 = vpop.f32.mrb[0].mxu0
    %v410 = vadd.f32 %v314, %v409
    %v411 = vpop.f32.mrb[0].mxu0
    %412 = vmatprep.mubr.f32.mxu0 0.0
    %413 = vmatmul.mubr.f32.gmra.mrb[0].mxu0 %v333
    %v414 = vpop.f32.mrb[0].mxu0
    %v415 = vadd.f32 %v319, %v414
    %v416 = vpop.f32.mrb[0].mxu0
    %417 = vmatprep.mubr.f32.mxu0 0.0
    %418 = vmatmul.mubr.f32.gmra.mrb[0].mxu0 %v336
    %v419 = vpop.f32.mrb[0].mxu0
    %v420 = vadd.f32 %v324, %v419
    %v421 = vpop.f32.mrb[0].mxu0
    %422 = vdwg.mxu0
    %v423 = vmax.f32 %v405, 0.0
    %v424 = vmax.f32 %v410, 0.0
    %v425 = vmax.f32 %v415, 0.0
    %v426 = vmax.f32 %v420, 0.0
    %v427 = vld [vmem:[%s7] sm:$0xff]
    %v428 = vld [vmem:[%s7 + $0x8] sm:$0xff]
    %v429 = vld [vmem:[%s7 + $0x10] sm:$0xff]
    %v430 = vld [vmem:[%s7 + $0x18] sm:$0xff]
    %432 = vset.pattern.permute.xlu0 0
    %433 = vperm.xlu0 %432, %v427
    %v434 = vpop.permute.xlu0 %433
    %437 = vset.pattern.permute.xlu0 0
    %438 = vperm.xlu0 %437, %v428
    %v439 = vpop.permute.xlu0 %438
    %442 = vset.pattern.permute.xlu0 0
    %443 = vperm.xlu0 %442, %v429
    %v444 = vpop.permute.xlu0 %443
    %447 = vset.pattern.permute.xlu0 0
    %448 = vperm.xlu0 %447, %v430
    %v449 = vpop.permute.xlu0 %448
    %v451 = vmul.f32 %v423, %v434
    %v452 = vmul.f32 %v424, %v439
    %v453 = vmul.f32 %v425, %v444
    %v454 = vmul.f32 %v426, %v449
    %vm455 = vcmask 64512
    %v456 = vsel %vm455, %v451, 0.0
    %v457 = vsel %vm455, %v452, 0.0
    %v458 = vadd.f32 %v456, %v457
    %v459 = vsel %vm455, %v453, 0.0
    %v460 = vadd.f32 %v458, %v459
    %v461 = vsel %vm455, %v454, 0.0
    %v462 = vadd.f32 %v460, %v461
    %v463 = vrot.slane %v462, 4
    %v464 = vadd.f32 %v462, %v463
    %v465 = vrot.slane %v464, 2
    %v466 = vadd.f32 %v464, %v465
    %v467 = vrot.slane %v466, 1
    %v468 = vadd.f32 %v466, %v467
    %v469 = vld [vmem:[#allocation2] sm:$0x1]
    %471 = vset.pattern.permute.xlu0 0
    %472 = vperm.xlu0 %471, %v469
    %v473 = vpop.permute.xlu0 %472
    %v475 = vlaneseq
    %v476 = vshrl.u32 %v475, 7
    %v477 = vsub.s32 0, %v476
    %v478 = vrot.slane %v473, %v477
    %v479 = vadd.f32 %v468, %v478
    %vm480 = vcmask 57344
    %481 = vst.msk [vmem:[#allocation3] sm:$0x1] %vm480, %v479
    // Predicated region
    $region38: #{tpu_custom_call.1} parent=1 // pred_check
      _
    $region39: #{tpu_custom_call.1} parent=1 // pred_check_branch
      %483 = sbr.rel (0) target = $region41
    $region40: #{tpu_custom_call.1} parent=1 // pred_region
      %s485 = ssub.s32 16, 16
      %486 = vsyncadd [#allocation4], %s485
      %s488 = sshll.u32 [#allocation3], 4
      %s489 = int_to_ptr.vmem [resolvable:$true] %s488
      %491 = dma.vmem_to_hbm [thread:$0]  %s489, 16, %s9, [#allocation4]
    $region41: #{tpu_custom_call.1} parent=1 // pred_fallthru
      _
    // Predicated region
    $region42: #{tpu_custom_call.1} parent=1 // pred_check
      _
    $region43: #{tpu_custom_call.1} parent=1 // pred_check_branch
      %493 = sbr.rel (0) target = $region45
    $region44: #{tpu_custom_call.1} parent=1 // pred_region
      %494 = dma.done [#allocation4], 16
    $region45: #{tpu_custom_call.1} parent=1 // pred_fallthru
      _
    %495 = vsyncpa [#allocation4], 1

</llo_original>
